<compile_context>
chip_gen: v7x
topology: tpu7x:2x2x1
jax: 0.10.0
libtpu: 0.0.40
codegen_flags: <defaults>
</compile_context>

<pallas_src>
import numpy as np
import jax
import jax.numpy as jnp
from jax.experimental import pallas as pl
from jax.experimental.pallas import tpu as pltpu


# ---------------------------------------------------------------------------
# Pallas copy kernel: lane-dense, row-tiled slab copy.
# ---------------------------------------------------------------------------
def _copy_kernel(param_ref, out_ref):
    out_ref[...] = param_ref[...]


_LANES = 128                    # lane-dense width -> unmasked full-width vst
_TARGET_TILE_BYTES = 2 << 20    # ~2 MiB per tile (safe on v5e/v6e/v7x)


def _sublane_quantum(dtype) -> int:
    """Packed sublane quantum: f32 -> 8, bf16 -> 16, int8/fp8 -> 32."""
    itemsize = jnp.dtype(dtype).itemsize
    return max(8, 32 // itemsize)


def _pallas_param_copy(learned_param):
    """Copy `learned_param` into a fresh buffer via a lane-dense tiled kernel."""
    orig_shape = learned_param.shape
    dtype = learned_param.dtype
    itemsize = jnp.dtype(dtype).itemsize
    n = int(np.prod(orig_shape)) if orig_shape else 1

    sublane = _sublane_quantum(dtype)

    # Rows of the (rows, 128) slab, aligned to the dtype's sublane quantum.
    rows_needed = pl.cdiv(n, _LANES)
    rows_aligned = pl.cdiv(rows_needed, sublane) * sublane

    # ~2 MiB tiles, rounded down to a sublane multiple, capped by the data.
    target_rows = max(sublane,
                      (_TARGET_TILE_BYTES // (_LANES * itemsize)) // sublane * sublane)
    tile_rows = min(target_rows, rows_aligned)

    # Pad the row count so the grid divides evenly (padding < one tile).
    rows = pl.cdiv(rows_aligned, tile_rows) * tile_rows
    n_pad = rows * _LANES

    flat = learned_param.reshape(-1)
    if n_pad != n:
        flat = jnp.pad(flat, (0, n_pad - n))
    slab = flat.reshape(rows, _LANES)

    out = pl.pallas_call(
        _copy_kernel,
        out_shape=jax.ShapeDtypeStruct((rows, _LANES), dtype),
        grid=(rows // tile_rows,),
        in_specs=[pl.BlockSpec((tile_rows, _LANES), lambda i: (i, 0))],
        out_specs=pl.BlockSpec((tile_rows, _LANES), lambda i: (i, 0)),
        compiler_params=pltpu.CompilerParams(
            # Shardable across v7x's 2 TensorCores; harmless on v5e/v6e.
            dimension_semantics=("parallel",),
        ),
    )(slab)

    return out.reshape(-1)[:n].reshape(orig_shape)


# ---------------------------------------------------------------------------
# Module forward.
# ---------------------------------------------------------------------------
def learned_input_forward(learned_param, x=None, *, copy=True):
    """Forward of LearnedInput: returns the learned parameter.

    `x` is accepted for API parity with the PyTorch module but ignored.
    copy=False: pure JAX identity (literally free, fuses with surrounding
                ops — the recommended path inside a larger model).
    copy=True : Pallas lane-dense tiled copy producing a fresh buffer
                (default here so the kernel path is exercised/validated).
    """
    del x  # forward ignores its input, exactly like the nn.Module
    if not copy:
        return learned_param
    return _pallas_param_copy(learned_param)


if __name__ == "__main__":
    key = jax.random.PRNGKey(0)
    k_param, k_x, k_odd = jax.random.split(key, 3)

    # Module __init__: torch.rand(dimensions) * 0.1 -> uniform[0, 0.1)
    dimensions = (2, 4, 16, 16)  # (B, C, H, W), NCHW like the PyTorch side
    learned_param = jax.random.uniform(k_param, dimensions, dtype=jnp.float32) * 0.1
    expected = np.asarray(learned_param)

    # The forward ignores x; construct one anyway to mirror the call signature.
    x = jax.random.normal(k_x, dimensions, dtype=jnp.float32)

    # Pallas copy path.
    out = jax.block_until_ready(learned_input_forward(learned_param, x, copy=True))
    assert out.shape == dimensions and out.dtype == jnp.float32
    assert np.array_equal(np.asarray(out), expected)

    # Zero-cost identity path.
    out_id = jax.block_until_ready(learned_input_forward(learned_param, x, copy=False))
    assert np.array_equal(np.asarray(out_id), expected)

    # Awkward (non-128-multiple) shape exercises the pad-and-slice path.
    odd_param = jax.random.uniform(k_odd, (3, 5, 7), dtype=jnp.float32) * 0.1
    out_odd = jax.block_until_ready(learned_input_forward(odd_param, None, copy=True))
    assert out_odd.shape == (3, 5, 7)
    assert np.array_equal(np.asarray(out_odd), np.asarray(odd_param))

    # bf16 exercises the dtype-aware sublane quantum (16).
    bf_param = (jax.random.uniform(k_odd, (5, 33), dtype=jnp.float32) * 0.1).astype(jnp.bfloat16)
    out_bf = jax.block_until_ready(learned_input_forward(bf_param, None, copy=True))
    assert out_bf.shape == (5, 33) and out_bf.dtype == jnp.bfloat16
    assert np.array_equal(np.asarray(out_bf, dtype=np.float32),
                          np.asarray(bf_param, dtype=np.float32))

    print("KERNEL_OK")
</pallas_src>

<mosaic_0001>
module attributes {stable_mosaic.version = 11 : i64} {
  func.func @_copy_kernel(%arg0: i32, %arg1: memref<16x128xf32, #tpu.memory_space<vmem>>, %arg2: memref<16x128xf32, #tpu.memory_space<vmem>>) attributes {dimension_semantics = [#tpu.dimension_semantics<parallel>], iteration_bounds = array<i64: 1>, scalar_prefetch = 0 : i64, scratch_operands = 0 : i64, tpu.core_type = #tpu.core_type<tc>, window_params = [{transform_indices = @transform_0, window_bounds = array<i64: 16, 128>}, {transform_indices = @transform_1, window_bounds = array<i64: 16, 128>}]} {
    %c0 = arith.constant 0 : index
    %c0_0 = arith.constant 0 : index
    %0 = vector.load %arg1[%c0, %c0_0] : memref<16x128xf32, #tpu.memory_space<vmem>>, vector<16x128xf32>
    %c0_1 = arith.constant 0 : index
    %c0_2 = arith.constant 0 : index
    %1 = vector.load %arg2[%c0_1, %c0_2] : memref<16x128xf32, #tpu.memory_space<vmem>>, vector<16x128xf32>
    tpu.vector_store %arg2[%c0_1, %c0_2], %0 {strides = array<i32>} : memref<16x128xf32, #tpu.memory_space<vmem>>, vector<16x128xf32>,
    return
  }
  func.func @transform_0(%arg0: i32) -> (i32, i32) {
    %c0_i32 = arith.constant 0 : i32
    %c0_i32_0 = arith.constant 0 : i32
    return %arg0, %c0_i32 : i32, i32
  }
  func.func @transform_1(%arg0: i32) -> (i32, i32) {
    %c0_i32 = arith.constant 0 : i32
    %c0_i32_0 = arith.constant 0 : i32
    return %arg0, %c0_i32 : i32, i32
  }
}

</mosaic_0001>

<llo_original>
// kernel: tpu_custom_call.1
$region0: #{tpu_custom_call.1}
  #allocation0 [shape = 'u32[]', space=smem, size = 0x4, offset = 0x4, fixed_abs, tag = 'smem constant byte address 0x4 - core index']
  #allocation1 [shape = 'u32[144,128]{1,0:T(1,128)}', space=vmem, size = 0x12000, scoped, tag = 'internal scratch']
  %s0 = inlined_call_operand.hbm [shape: f32[16,128], index: 0, kind: input, shape index: {}]
  %s1 = inlined_call_operand.hbm [shape: f32[16,128], index: 1, kind: output, shape index: {}]
  %s2 = sld [smem:[#allocation0]]
  $region18: #{tpu_custom_call.1} parent=0
    _
  %s4 = ssub.s32 1, %s2
  %s5 = scalar_select 0, %s4, %s2
  $region1: #{tpu_custom_call.1} parent=0
    #allocation2 [shape = 'u8[8192]{0}', space=vmem, size = 0x2000, scoped, tag = 'input window, operand 0, single buffered']
    #allocation3 [shape = 's32[1]{0}', space=sflag, size = 0x4, scoped, tag = 'scoped memory for tpu_custom_call.1']
    #allocation4 [shape = 's32[1]{0}', space=sflag, size = 0x4, scoped, tag = 'scoped memory for tpu_custom_call.1']
    #allocation5 [shape = 'u8[8192]{0}', space=vmem, size = 0x2000, scoped, tag = 'output window, operand 0, single buffered']
    %6 = vsyncpa [#allocation3], 0
    %7 = vsyncpa [#allocation4], 0
    // Predicated region
    $region2: #{tpu_custom_call.1} parent=1 // pred_check
      _
    $region3: #{tpu_custom_call.1} parent=1 // pred_check_branch
      %9 = sbr.rel (0) target = $region5
    $region4: #{tpu_custom_call.1} parent=1 // pred_region
      %s11 = ssub.s32 256, 256
      %12 = vsyncadd [#allocation3], %s11
      %s13 = sshll.u32 [#allocation2], 4
      %s14 = int_to_ptr.vmem [resolvable:$true] %s13
      %19 = dma.hbm_to_vmem [thread:$0]  %s0, 256, %s14, [#allocation3], 128, 128, 8
    $region5: #{tpu_custom_call.1} parent=1 // pred_fallthru
      _
    // Predicated region
    $region6: #{tpu_custom_call.1} parent=1 // pred_check
      _
    $region7: #{tpu_custom_call.1} parent=1 // pred_check_branch
      %21 = sbr.rel (0) target = $region9
    $region8: #{tpu_custom_call.1} parent=1 // pred_region
      %22 = dma.done [#allocation3], 256
    $region9: #{tpu_custom_call.1} parent=1 // pred_fallthru
      _
    %v23 = vld [vmem:[#allocation2] sm:$0xff]
    %v24 = vld [vmem:[#allocation2 + $0x8] sm:$0xff]
    %25 = vst [vmem:[#allocation5] sm:$0xff] %v23
    %26 = vst [vmem:[#allocation5 + $0x8] sm:$0xff] %v24
    // Predicated region
    $region10: #{tpu_custom_call.1} parent=1 // pred_check
      _
    $region11: #{tpu_custom_call.1} parent=1 // pred_check_branch
      %28 = sbr.rel (0) target = $region13
    $region12: #{tpu_custom_call.1} parent=1 // pred_region
      %s30 = ssub.s32 256, 256
      %31 = vsyncadd [#allocation4], %s30
      %s32 = sshll.u32 [#allocation5], 4
      %s33 = int_to_ptr.vmem [resolvable:$true] %s32
      %38 = dma.vmem_to_hbm [thread:$0]  %s33, 256, %s1, [#allocation4], 128, 128, 8
    $region13: #{tpu_custom_call.1} parent=1 // pred_fallthru
      _
    // Predicated region
    $region14: #{tpu_custom_call.1} parent=1 // pred_check
      _
    $region15: #{tpu_custom_call.1} parent=1 // pred_check_branch
      %40 = sbr.rel (0) target = $region17
    $region16: #{tpu_custom_call.1} parent=1 // pred_region
      %41 = dma.done [#allocation4], 256
    $region17: #{tpu_custom_call.1} parent=1 // pred_fallthru
      _
    %42 = vsyncpa [#allocation3], 1
    %43 = vsyncpa [#allocation4], 1

</llo_original>
